<compile_context>
chip_gen: v5e
topology: v5e:2x2
jax: 0.10.0
libtpu: 0.0.40
codegen_flags: <defaults>
</compile_context>

<pallas_src>
import jax
import jax.numpy as jnp
from jax import lax
from jax.experimental import pallas as pl
from jax.experimental.pallas import tpu as pltpu


def _round_up(n: int, m: int) -> int:
    return ((n + m - 1) // m) * m


def _cdiv(a: int, b: int) -> int:
    return (a + b - 1) // b


def _mlp_kernel(x_ref, w1_ref, b1_ref, w2_ref, b2_ref, o_ref):
    # ---- layer 1: hidden = relu(x @ w1 + b1) -------------------------------
    # (TM, K) @ (K, Hp) -> (TM, Hp) on the MXU, f32 accumulation.
    h = jnp.dot(x_ref[...], w1_ref[...], preferred_element_type=jnp.float32)
    h = jnp.maximum(h + b1_ref[...], 0.0)            # bias + ReLU in f32 (VPU)

    # ---- layer 2: out = hidden @ w2 + b2 -----------------------------------
    # N == 1, so instead of a (TM, 1) matmul (one MXU lane + masked partial
    # stores) contract the w2 slab (8, Hp), real weights in row 0, against h's
    # minor dim -> (8, TM): a lane-dense output block.
    o = lax.dot_general(
        w2_ref[...], h,
        dimension_numbers=(((1,), (1,)), ((), ())),
        preferred_element_type=jnp.float32,
    )
    o_ref[...] = (o + b2_ref[0]).astype(o_ref.dtype)   # b2 scalar from SMEM


def net_forward(x, w1, b1, w2, b2, *, block_rows=2048):
    """Forward pass of Net.

    x  : (B, in_features)          -- streamed unpadded; bf16 is used on the MXU
                                      only if x already arrives as bf16.
    w1 : (in_features, hidden1)    -- transposed vs. torch Linear.weight
    b1 : (hidden1,) or (1, hidden1)
    w2 : (hidden1, 1)
    b2 : scalar / (1,) / (1, 1)
    returns (B, 1) float32
    """
    assert block_rows % 128 == 0 and block_rows >= 128
    B, K = x.shape
    H = w1.shape[1]
    Hp = _round_up(H, 128)                    # lane-pad hidden1 only

    # Batch tile: biggest multiple of 128 up to block_rows, but keep >= 2 grid
    # steps when the batch spans more than one 128-row tile, so the "parallel"
    # batch axis gives both v7x TensorCores work.
    TM = min(block_rows, _round_up(B, 128))
    n_blocks = _cdiv(B, TM)
    if n_blocks == 1 and TM > 128:
        TM = max(128, _round_up(_cdiv(B, 2), 128))
        n_blocks = _cdiv(B, TM)
    Bp = n_blocks * TM                        # padded output columns (sliced off)

    # bf16 MXU path only if the caller already provides bf16; never cast x here.
    if x.dtype == jnp.bfloat16:
        mxu_dtype = jnp.bfloat16
    else:
        mxu_dtype = jnp.float32
        if x.dtype != jnp.float32:
            x = x.astype(jnp.float32)

    # Only the (tiny) weights/biases are padded/copied.
    w1p = jnp.zeros((K, Hp), mxu_dtype).at[:, :H].set(w1.astype(mxu_dtype))
    b1p = jnp.zeros((1, Hp), jnp.float32).at[:, :H].set(
        jnp.asarray(b1, jnp.float32).reshape(1, H))
    w2p = jnp.zeros((8, Hp), jnp.float32).at[0, :H].set(
        jnp.asarray(w2, jnp.float32).reshape(H))
    b2p = jnp.asarray(b2, jnp.float32).reshape(1)      # scalar -> SMEM

    x_item = jnp.dtype(mxu_dtype).itemsize
    cost = pl.CostEstimate(
        flops=2 * Bp * K * Hp + 2 * 8 * Bp * Hp + 2 * Bp * Hp,
        transcendentals=0,                    # ReLU only; update if activation changes
        bytes_accessed=(B * K * x_item + K * Hp * x_item
                        + Hp * 4 + 8 * Hp * 4 + 4 + 8 * Bp * 4),
    )

    out = pl.pallas_call(
        _mlp_kernel,
        out_shape=jax.ShapeDtypeStruct((8, Bp), jnp.float32),
        grid=(n_blocks,),
        in_specs=[
            pl.BlockSpec((TM, K), lambda i: (i, 0)),    # x: streamed, unpadded K
            pl.BlockSpec((K, Hp), lambda i: (0, 0)),    # w1: resident in VMEM
            pl.BlockSpec((1, Hp), lambda i: (0, 0)),    # b1: resident
            pl.BlockSpec((8, Hp), lambda i: (0, 0)),    # w2 slab: resident
            pl.BlockSpec(memory_space=pltpu.MemorySpace.SMEM),   # b2 scalar
        ],
        out_specs=pl.BlockSpec((8, TM), lambda i: (0, i)),   # lane-dense output
        compiler_params=pltpu.CompilerParams(
            dimension_semantics=("parallel",),
        ),
        cost_estimate=cost,
    )(x, w1p, b1p, w2p, b2p)

    # Row 0 holds the real result; drop batch padding and match torch's (B, 1).
    # NOTE: never reduce over / reuse the unsliced (8, Bp) kernel output -- the
    # padded columns hold relu(b1)@w2 + b2 (or garbage rows), not zeros.
    return out[0, :B].reshape(B, 1)


def init_params(key, in_features, hidden1):
    """Deterministic init matching nn.Linear shapes (stored transposed)."""
    k1, k2, k3, k4 = jax.random.split(key, 4)
    lim1 = 1.0 / jnp.sqrt(in_features)
    lim2 = 1.0 / jnp.sqrt(hidden1)
    w1 = jax.random.uniform(k1, (in_features, hidden1), jnp.float32, -lim1, lim1)
    b1 = jax.random.uniform(k2, (1, hidden1), jnp.float32, -lim1, lim1)
    w2 = jax.random.uniform(k3, (hidden1, 1), jnp.float32, -lim2, lim2)
    b2 = jax.random.uniform(k4, (1, 1), jnp.float32, -lim2, lim2)
    return w1, b1, w2, b2


if __name__ == "__main__":
    # Shapes consistent with the module:
    #   in_features = nchannels * maxlen  (one-hot-flattened expression)
    batch = 8
    nchannels = 4
    maxlen = 16
    in_features = nchannels * maxlen   # 64
    hidden1 = 32

    key = jax.random.PRNGKey(0)
    kx, kp, kx2, kx3 = jax.random.split(key, 4)
    x = jax.random.uniform(kx, (batch, in_features), jnp.float32)
    w1, b1, w2, b2 = init_params(kp, in_features, hidden1)

    def ref_forward(xv):  # plain-JAX reference (same math as PyTorch forward)
        return jnp.maximum(xv.astype(jnp.float32) @ w1 + b1, 0.0) @ w2 + b2

    # Tolerances are kept loose-ish (1e-2) because the XLA reference itself uses
    # default (bf16-pass) matmul precision on TPU.
    # 1) small batch, f32 path, single 128-row block.
    out = net_forward(x, w1, b1, w2, b2)
    jax.block_until_ready(out)
    assert out.shape == (batch, 1)
    assert jnp.allclose(out, ref_forward(x), atol=1e-2, rtol=1e-2)

    # 2) B=300 exercises the ">=2 grid steps" heuristic (TM=256, 2 blocks) and a
    #    partial last x block.
    x2 = jax.random.uniform(kx2, (300, in_features), jnp.float32)
    out2 = net_forward(x2, w1, b1, w2, b2)
    jax.block_until_ready(out2)
    assert out2.shape == (300, 1)
    assert jnp.allclose(out2, ref_forward(x2), atol=1e-2, rtol=1e-2)

    # 3) large batch exercising the default big tile (4096 -> 2 blocks of 2048).
    x3 = jax.random.uniform(kx3, (4096, in_features), jnp.float32)
    out3 = net_forward(x3, w1, b1, w2, b2)
    jax.block_until_ready(out3)
    assert out3.shape == (4096, 1)
    assert jnp.allclose(out3, ref_forward(x3), atol=1e-2, rtol=1e-2)

    # 4) x already arriving in bf16 -> bf16 MXU operands, f32 accumulation.
    out4 = net_forward(x.astype(jnp.bfloat16), w1, b1, w2, b2)
    jax.block_until_ready(out4)
    assert jnp.allclose(out4, ref_forward(x), atol=5e-2, rtol=5e-2)

    print("KERNEL_OK")
</pallas_src>

<mosaic_0001>
module attributes {stable_mosaic.version = 11 : i64} {
  func.func @_mlp_kernel(%arg0: i32, %arg1: memref<128x64xf32, #tpu.memory_space<vmem>>, %arg2: memref<64x128xf32, #tpu.memory_space<vmem>>, %arg3: memref<1x128xf32, #tpu.memory_space<vmem>>, %arg4: memref<8x128xf32, #tpu.memory_space<vmem>>, %arg5: memref<1xf32, #tpu.memory_space<smem>>, %arg6: memref<8x128xf32, #tpu.memory_space<vmem>>) attributes {dimension_semantics = [#tpu.dimension_semantics<parallel>], iteration_bounds = array<i64: 1>, scalar_prefetch = 0 : i64, scratch_operands = 0 : i64, tpu.core_type = #tpu.core_type<tc>, window_params = [{transform_indices = @transform_0, window_bounds = array<i64: 128, 64>}, {pipeline_mode = #tpu.pipeline_mode<synchronous>, transform_indices = @transform_1, window_bounds = array<i64: 64, 128>}, {pipeline_mode = #tpu.pipeline_mode<synchronous>, transform_indices = @transform_2, window_bounds = array<i64: 1, 128>}, {pipeline_mode = #tpu.pipeline_mode<synchronous>, transform_indices = @transform_3, window_bounds = array<i64: 8, 128>}, {transform_indices = @transform_4, window_bounds = array<i64: 1>}, {transform_indices = @transform_5, window_bounds = array<i64: 8, 128>}]} {
    %c0 = arith.constant 0 : index
    %c0_0 = arith.constant 0 : index
    %0 = vector.load %arg1[%c0, %c0_0] : memref<128x64xf32, #tpu.memory_space<vmem>>, vector<128x64xf32>
    %c0_1 = arith.constant 0 : index
    %c0_2 = arith.constant 0 : index
    %1 = vector.load %arg2[%c0_1, %c0_2] : memref<64x128xf32, #tpu.memory_space<vmem>>, vector<64x128xf32>
    %cst = arith.constant dense<0.000000e+00> : vector<128x128xf32>
    %2 = tpu.matmul %0, %1, %cst {dimension_numbers = #tpu.dot_dimension_numbers<[1], [0], [0], [1], [0, 0, 1, 1], [], []>} : vector<128x64xf32>, vector<64x128xf32>, vector<128x128xf32> -> vector<128x128xf32>
    %c0_3 = arith.constant 0 : index
    %c0_4 = arith.constant 0 : index
    %3 = vector.load %arg3[%c0_3, %c0_4] : memref<1x128xf32, #tpu.memory_space<vmem>>, vector<1x128xf32>
    %4 = vector.broadcast %3 : vector<1x128xf32> to vector<128x128xf32>
    %5 = arith.addf %2, %4 : vector<128x128xf32>
    %cst_5 = arith.constant 0.000000e+00 : f32
    %6 = vector.broadcast %cst_5 : f32 to vector<128x128xf32>
    %7 = arith.maximumf %5, %6 : vector<128x128xf32>
    %c0_6 = arith.constant 0 : index
    %c0_7 = arith.constant 0 : index
    %8 = vector.load %arg4[%c0_6, %c0_7] : memref<8x128xf32, #tpu.memory_space<vmem>>, vector<8x128xf32>
    %cst_8 = arith.constant dense<0.000000e+00> : vector<8x128xf32>
    %9 = tpu.matmul %8, %7, %cst_8 {dimension_numbers = #tpu.dot_dimension_numbers<[1], [1], [0], [0], [0, 0, 1, 0], [], []>} : vector<8x128xf32>, vector<128x128xf32>, vector<8x128xf32> -> vector<8x128xf32>
    %c0_9 = arith.constant 0 : index
    %10 = memref.load %arg5[%c0_9] : memref<1xf32, #tpu.memory_space<smem>>
    %11 = vector.broadcast %10 : f32 to vector<8x128xf32>
    %12 = arith.addf %9, %11 : vector<8x128xf32>
    %c0_10 = arith.constant 0 : index
    %c0_11 = arith.constant 0 : index
    %13 = vector.load %arg6[%c0_10, %c0_11] : memref<8x128xf32, #tpu.memory_space<vmem>>, vector<8x128xf32>
    tpu.vector_store %arg6[%c0_10, %c0_11], %12 {strides = array<i32>} : memref<8x128xf32, #tpu.memory_space<vmem>>, vector<8x128xf32>,
    return
  }
  func.func @transform_0(%arg0: i32) -> (i32, i32) {
    %c0_i32 = arith.constant 0 : i32
    %c0_i32_0 = arith.constant 0 : i32
    return %arg0, %c0_i32 : i32, i32
  }
  func.func @transform_1(%arg0: i32) -> (i32, i32) {
    %c0_i32 = arith.constant 0 : i32
    %c0_i32_0 = arith.constant 0 : i32
    %c0_i32_1 = arith.constant 0 : i32
    return %c0_i32, %c0_i32_0 : i32, i32
  }
  func.func @transform_2(%arg0: i32) -> (i32, i32) {
    %c0_i32 = arith.constant 0 : i32
    %c0_i32_0 = arith.constant 0 : i32
    %c0_i32_1 = arith.constant 0 : i32
    return %c0_i32, %c0_i32_0 : i32, i32
  }
  func.func @transform_3(%arg0: i32) -> (i32, i32) {
    %c0_i32 = arith.constant 0 : i32
    %c0_i32_0 = arith.constant 0 : i32
    %c0_i32_1 = arith.constant 0 : i32
    return %c0_i32, %c0_i32_0 : i32, i32
  }
  func.func @transform_4(%arg0: i32) -> i32 {
    %c0_i32 = arith.constant 0 : i32
    %c0_i32_0 = arith.constant 0 : i32
    return %c0_i32 : i32
  }
  func.func @transform_5(%arg0: i32) -> (i32, i32) {
    %c0_i32 = arith.constant 0 : i32
    %c0_i32_0 = arith.constant 0 : i32
    return %c0_i32, %arg0 : i32, i32
  }
}

</mosaic_0001>

<llo_original>
// kernel: tpu_custom_call.1
$region0: #{tpu_custom_call.1}
  #allocation0 [shape = 'u32[]', space=smem, size = 0x4, offset = 0x4, fixed_abs, tag = 'smem constant byte address 0x4 - core index']
  #allocation1 [shape = 'u32[72,128]{1,0:T(1,128)}', space=vmem, size = 0x9000, scoped, tag = 'internal scratch']
  #allocation2 [shape = 'f32[1]{0:T(128)S(6)}', space=smem, size = 0x200, scoped, tag = 'scoped memory for tpu_custom_call.1']
  %s0 = inlined_call_operand.hbm [shape: f32[8,64], index: 0, kind: input, shape index: {}]
  %s1 = inlined_call_operand.hbm [shape: f32[64,128], index: 1, kind: input, shape index: {}]
  %s2 = inlined_call_operand.vmem [shape: f32[1,128], index: 2, kind: input, shape index: {}]
  %s3 = inlined_call_operand.hbm [shape: f32[8,128], index: 3, kind: input, shape index: {}]
  %s4 = inlined_call_operand.<no memory space> [shape: f32[1], index: 4, kind: input, shape index: {}]
  %s5 = inlined_call_operand.hbm [shape: f32[8,128], index: 5, kind: output, shape index: {}]
  %s6 = sld [smem:[#allocation0]]
  $region42: #{tpu_custom_call.1} parent=0
    _
  %s8 = ssub.s32 1, %s6
  %s9 = scalar_select 0, %s8, %s6
  %10 = sst [smem:[#allocation2]] %s4
  $region1: #{tpu_custom_call.1} parent=0
    #allocation3 [shape = 'u8[65536]{0}', space=vmem, size = 0x10000, scoped, tag = 'input window, operand 0, single buffered']
    #allocation4 [shape = 's32[1]{0}', space=sflag, size = 0x4, scoped, tag = 'scoped memory for tpu_custom_call.1']
    #allocation5 [shape = 's32[1]{0}', space=sflag, size = 0x4, scoped, tag = 'scoped memory for tpu_custom_call.1']
    #allocation6 [shape = 'u8[32768]{0}', space=vmem, size = 0x8000, scoped, tag = 'input window, operand 1, single buffered']
    #allocation7 [shape = 's32[1]{0}', space=sflag, size = 0x4, scoped, tag = 'scoped memory for tpu_custom_call.1']
    #allocation8 [shape = 'u8[4096]{0}', space=vmem, size = 0x1000, scoped, tag = 'input window, operand 3, single buffered']
    #allocation9 [shape = 'u8[4096]{0}', space=vmem, size = 0x1000, scoped, tag = 'output window, operand 0, single buffered']
    %11 = vsyncpa [#allocation4], 0
    %12 = vsyncpa [#allocation7], 0
    %13 = vsyncpa [#allocation5], 0
    // Predicated region
    $region2: #{tpu_custom_call.1} parent=1 // pred_check
      _
    $region3: #{tpu_custom_call.1} parent=1 // pred_check_branch
      %15 = sbr.rel (0) target = $region5
    $region4: #{tpu_custom_call.1} parent=1 // pred_region
      %17 = vsyncadd [#allocation4], 1920
      %s18 = sshll.u32 %s0, 4
      %s19 = int_to_ptr.hbm [resolvable:$true] %s18
      %s20 = sshll.u32 [#allocation3], 4
      %s21 = int_to_ptr.vmem [resolvable:$true] %s20
      %26 = dma.hbm_to_vmem [thread:$0]  %s19, 128, %s21, [#allocation4], 128, 128, 8
    $region5: #{tpu_custom_call.1} parent=1 // pred_fallthru
      _
    // Predicated region
    $region6: #{tpu_custom_call.1} parent=1 // pred_check
      _
    $region7: #{tpu_custom_call.1} parent=1 // pred_check_branch
      %28 = sbr.rel (0) target = $region9
    $region8: #{tpu_custom_call.1} parent=1 // pred_region
      %30 = vsyncadd [#allocation7], 0
      %s31 = sshll.u32 %s1, 4
      %s32 = int_to_ptr.hbm [resolvable:$true] %s31
      %s33 = sshll.u32 [#allocation6], 4
      %s34 = int_to_ptr.vmem [resolvable:$true] %s33
      %39 = dma.hbm_to_vmem [thread:$0]  %s32, 1024, %s34, [#allocation7], 128, 128, 8
    $region9: #{tpu_custom_call.1} parent=1 // pred_fallthru
      _
    // Predicated region
    $region10: #{tpu_custom_call.1} parent=1 // pred_check
      _
    $region11: #{tpu_custom_call.1} parent=1 // pred_check_branch
      %41 = sbr.rel (0) target = $region13
    $region12: #{tpu_custom_call.1} parent=1 // pred_region
      _
    $region13: #{tpu_custom_call.1} parent=1 // pred_fallthru
      _
    // Predicated region
    $region14: #{tpu_custom_call.1} parent=1 // pred_check
      _
    $region15: #{tpu_custom_call.1} parent=1 // pred_check_branch
      %43 = sbr.rel (0) target = $region17
    $region16: #{tpu_custom_call.1} parent=1 // pred_region
      %45 = vsyncadd [#allocation7], 0
      %s47 = sshll.u32 %s3, 4
      %s48 = int_to_ptr.hbm [resolvable:$true] %s47
      %s49 = sshll.u32 [#allocation8], 4
      %s50 = int_to_ptr.vmem [resolvable:$true] %s49
      %52 = dma.hbm_to_vmem [thread:$0]  %s48, 128, %s50, [#allocation7]
    $region17: #{tpu_custom_call.1} parent=1 // pred_fallthru
      _
    // Predicated region
    $region18: #{tpu_custom_call.1} parent=1 // pred_check
      _
    $region19: #{tpu_custom_call.1} parent=1 // pred_check_branch
      %54 = sbr.rel (0) target = $region21
    $region20: #{tpu_custom_call.1} parent=1 // pred_region
      _
    $region21: #{tpu_custom_call.1} parent=1 // pred_fallthru
      _
    // Predicated region
    $region22: #{tpu_custom_call.1} parent=1 // pred_check
      _
    $region23: #{tpu_custom_call.1} parent=1 // pred_check_branch
      %56 = sbr.rel (0) target = $region25
    $region24: #{tpu_custom_call.1} parent=1 // pred_region
      %58 = dma.done [#allocation4], 2048
    $region25: #{tpu_custom_call.1} parent=1 // pred_fallthru
      _
    // Predicated region
    $region26: #{tpu_custom_call.1} parent=1 // pred_check
      _
    $region27: #{tpu_custom_call.1} parent=1 // pred_check_branch
      %60 = sbr.rel (0) target = $region29
    $region28: #{tpu_custom_call.1} parent=1 // pred_region
      %62 = dma.done [#allocation7], 1024
    $region29: #{tpu_custom_call.1} parent=1 // pred_fallthru
      _
    // Predicated region
    $region30: #{tpu_custom_call.1} parent=1 // pred_check
      _
    $region31: #{tpu_custom_call.1} parent=1 // pred_check_branch
      %64 = sbr.rel (0) target = $region33
    $region32: #{tpu_custom_call.1} parent=1 // pred_region
      %66 = dma.done [#allocation7], 128
    $region33: #{tpu_custom_call.1} parent=1 // pred_fallthru
      _
    %v67 = vld [vmem:[#allocation3] sm:$0xff]
    %v68 = vld [vmem:[#allocation3 + $0x8] sm:$0xff]
    %v69 = vld [vmem:[#allocation3 + $0x10] sm:$0xff]
    %v70 = vld [vmem:[#allocation3 + $0x18] sm:$0xff]
    %v71 = vld [vmem:[#allocation3 + $0x20] sm:$0xff]
    %v72 = vld [vmem:[#allocation3 + $0x28] sm:$0xff]
    %v73 = vld [vmem:[#allocation3 + $0x30] sm:$0xff]
    %v74 = vld [vmem:[#allocation3 + $0x38] sm:$0xff]
    %v75 = vld [vmem:[#allocation3 + $0x40] sm:$0xff]
    %v76 = vld [vmem:[#allocation3 + $0x48] sm:$0xff]
    %v77 = vld [vmem:[#allocation3 + $0x50] sm:$0xff]
    %v78 = vld [vmem:[#allocation3 + $0x58] sm:$0xff]
    %v79 = vld [vmem:[#allocation3 + $0x60] sm:$0xff]
    %v80 = vld [vmem:[#allocation3 + $0x68] sm:$0xff]
    %v81 = vld [vmem:[#allocation3 + $0x70] sm:$0xff]
    %v82 = vld [vmem:[#allocation3 + $0x78] sm:$0xff]
    %v83 = vld [vmem:[#allocation6] sm:$0xff]
    %v84 = vld [vmem:[#allocation6 + $0x8] sm:$0xff]
    %v85 = vld [vmem:[#allocation6 + $0x10] sm:$0xff]
    %v86 = vld [vmem:[#allocation6 + $0x18] sm:$0xff]
    %v87 = vld [vmem:[#allocation6 + $0x20] sm:$0xff]
    %v88 = vld [vmem:[#allocation6 + $0x28] sm:$0xff]
    %v89 = vld [vmem:[#allocation6 + $0x30] sm:$0xff]
    %v90 = vld [vmem:[#allocation6 + $0x38] sm:$0xff]
    %v91 = vld [vmem:[%s2] sm:$0x1]
    %v93 = vperm.slane %v91, 0
    %vm95 = vcmask 523264
    %v97 = vsel %vm95, %v67, 0
    %v100 = vsel %vm95, %v68, 0
    %v103 = vsel %vm95, %v69, 0
    %v106 = vsel %vm95, %v70, 0
    %v109 = vsel %vm95, %v71, 0
    %v112 = vsel %vm95, %v72, 0
    %v115 = vsel %vm95, %v73, 0
    %v118 = vsel %vm95, %v74, 0
    %v121 = vsel %vm95, %v75, 0
    %v124 = vsel %vm95, %v76, 0
    %v127 = vsel %vm95, %v77, 0
    %v130 = vsel %vm95, %v78, 0
    %v133 = vsel %vm95, %v79, 0
    %v136 = vsel %vm95, %v80, 0
    %v139 = vsel %vm95, %v81, 0
    %v142 = vsel %vm95, %v82, 0
    %144 = vmatpush.msra.mxu0 0.0
    %145 = vmatpush.msra.mxu0 0.0
    %146 = vmatpush.msra.mxu0 0.0
    %147 = vmatpush.msra.mxu0 0.0
    %148 = vmatpush.msra.mxu0 0.0
    %149 = vmatpush.msra.mxu0 0.0
    %150 = vmatpush.msra.mxu0 0.0
    %151 = vmatpush.msra.mxu0 0.0
    %152 = vmatpush.msra.mxu0 %v90
    %153 = vmatpush.msra.mxu0 %v89
    %154 = vmatpush.msra.mxu0 %v88
    %155 = vmatpush.msra.mxu0 %v87
    %156 = vmatpush.msra.mxu0 %v86
    %157 = vmatpush.msra.mxu0 %v85
    %158 = vmatpush.msra.mxu0 %v84
    %159 = vmatpush.msra.mxu0 %v83
    %160 = vmatmul.f32.gmra.mxu0 %v97
    %v161 = vpop.f32.mrf.mxu0
    %v162 = vadd.f32 %v93, %v161
    %163 = vmatmul.f32.gmra.mxu0 %v100
    %v164 = vpop.f32.mrf.mxu0
    %v165 = vadd.f32 %v93, %v164
    %166 = vmatmul.f32.gmra.mxu0 %v103
    %v167 = vpop.f32.mrf.mxu0
    %v168 = vadd.f32 %v93, %v167
    %169 = vmatmul.f32.gmra.mxu0 %v106
    %v170 = vpop.f32.mrf.mxu0
    %v171 = vadd.f32 %v93, %v170
    %172 = vmatmul.f32.gmra.mxu0 %v109
    %v173 = vpop.f32.mrf.mxu0
    %v174 = vadd.f32 %v93, %v173
    %175 = vmatmul.f32.gmra.mxu0 %v112
    %v176 = vpop.f32.mrf.mxu0
    %v177 = vadd.f32 %v93, %v176
    %178 = vmatmul.f32.gmra.mxu0 %v115
    %v179 = vpop.f32.mrf.mxu0
    %v180 = vadd.f32 %v93, %v179
    %181 = vmatmul.f32.gmra.mxu0 %v118
    %v182 = vpop.f32.mrf.mxu0
    %v183 = vadd.f32 %v93, %v182
    %184 = vmatmul.f32.gmra.mxu0 %v121
    %v185 = vpop.f32.mrf.mxu0
    %v186 = vadd.f32 %v93, %v185
    %187 = vmatmul.f32.gmra.mxu0 %v124
    %v188 = vpop.f32.mrf.mxu0
    %v189 = vadd.f32 %v93, %v188
    %190 = vmatmul.f32.gmra.mxu0 %v127
    %v191 = vpop.f32.mrf.mxu0
    %v192 = vadd.f32 %v93, %v191
    %193 = vmatmul.f32.gmra.mxu0 %v130
    %v194 = vpop.f32.mrf.mxu0
    %v195 = vadd.f32 %v93, %v194
    %196 = vmatmul.f32.gmra.mxu0 %v133
    %v197 = vpop.f32.mrf.mxu0
    %v198 = vadd.f32 %v93, %v197
    %199 = vmatmul.f32.gmra.mxu0 %v136
    %v200 = vpop.f32.mrf.mxu0
    %v201 = vadd.f32 %v93, %v200
    %202 = vmatmul.f32.gmra.mxu0 %v139
    %v203 = vpop.f32.mrf.mxu0
    %v204 = vadd.f32 %v93, %v203
    %205 = vmatmul.f32.gmra.mxu0 %v142
    %v206 = vpop.f32.mrf.mxu0
    %v207 = vadd.f32 %v93, %v206
    %208 = vdwg.mxu0
    %v209 = vmax.f32 %v162, 0.0
    %v210 = vmax.f32 %v165, 0.0
    %v211 = vmax.f32 %v168, 0.0
    %v212 = vmax.f32 %v171, 0.0
    %v213 = vmax.f32 %v174, 0.0
    %v214 = vmax.f32 %v177, 0.0
    %v215 = vmax.f32 %v180, 0.0
    %v216 = vmax.f32 %v183, 0.0
    %v217 = vmax.f32 %v186, 0.0
    %v218 = vmax.f32 %v189, 0.0
    %v219 = vmax.f32 %v192, 0.0
    %v220 = vmax.f32 %v195, 0.0
    %v221 = vmax.f32 %v198, 0.0
    %v222 = vmax.f32 %v201, 0.0
    %v223 = vmax.f32 %v204, 0.0
    %v224 = vmax.f32 %v207, 0.0
    %v225 = vld [vmem:[#allocation8] sm:$0xff]
    %s226 = sld [smem:[#allocation2]]
    %v227 = vstv %s226
    %228 = vmatpush.xpose.msra.mxu0 %v224
    %229 = vmatpush.xpose.msra.mxu0 %v223
    %230 = vmatpush.xpose.msra.mxu0 %v222
    %231 = vmatpush.xpose.msra.mxu0 %v221
    %232 = vmatpush.xpose.msra.mxu0 %v220
    %233 = vmatpush.xpose.msra.mxu0 %v219
    %234 = vmatpush.xpose.msra.mxu0 %v218
    %235 = vmatpush.xpose.msra.mxu0 %v217
    %236 = vmatpush.xpose.msra.mxu0 %v216
    %237 = vmatpush.xpose.msra.mxu0 %v215
    %238 = vmatpush.xpose.msra.mxu0 %v214
    %239 = vmatpush.xpose.msra.mxu0 %v213
    %240 = vmatpush.xpose.msra.mxu0 %v212
    %241 = vmatpush.xpose.msra.mxu0 %v211
    %242 = vmatpush.xpose.msra.mxu0 %v210
    %243 = vmatpush.xpose.msra.mxu0 %v209
    %244 = vmatmul.f32.gmra.mxu0 %v225
    %v245 = vpop.f32.mrf.mxu0
    %v246 = vadd.f32 %v227, %v245
    %247 = vdwg.mxu0
    %248 = vst [vmem:[#allocation9] sm:$0xff] %v246
    // Predicated region
    $region34: #{tpu_custom_call.1} parent=1 // pred_check
      _
    $region35: #{tpu_custom_call.1} parent=1 // pred_check_branch
      %250 = sbr.rel (0) target = $region37
    $region36: #{tpu_custom_call.1} parent=1 // pred_region
      %252 = vsyncadd [#allocation5], 0
      %s254 = sshll.u32 [#allocation9], 4
      %s255 = int_to_ptr.vmem [resolvable:$true] %s254
      %s256 = sshll.u32 %s5, 4
      %s257 = int_to_ptr.hbm [resolvable:$true] %s256
      %259 = dma.vmem_to_hbm [thread:$0]  %s255, 128, %s257, [#allocation5]
    $region37: #{tpu_custom_call.1} parent=1 // pred_fallthru
      _
    // Predicated region
    $region38: #{tpu_custom_call.1} parent=1 // pred_check
      _
    $region39: #{tpu_custom_call.1} parent=1 // pred_check_branch
      %261 = sbr.rel (0) target = $region41
    $region40: #{tpu_custom_call.1} parent=1 // pred_region
      %263 = dma.done [#allocation5], 128
    $region41: #{tpu_custom_call.1} parent=1 // pred_fallthru
      _
    %264 = vsyncpa [#allocation4], 1
    %265 = vsyncpa [#allocation7], 1
    %266 = vsyncpa [#allocation5], 1

</llo_original>
